<compile_context>
chip_gen: v6e
topology: v6e:2x2x1
jax: 0.10.0
libtpu: 0.0.40
codegen_flags: <defaults>
</compile_context>

<pallas_src>
import jax
import jax.numpy as jnp
from jax import lax
from jax.experimental import pallas as pl
from jax.experimental.pallas import tpu as pltpu


# ---------------------------------------------------------------------------
# Fused Pallas kernel: conv1 -> relu -> conv2 -> relu -> flatten -> fc
#                      -> action mask -> softmax
# ---------------------------------------------------------------------------
def _fused_forward_kernel(p1_ref, w1_ref, b1_ref, w2t_ref, b2_ref,
                          wf_ref, bf_ref, a_ref, o_ref):
    B = o_ref.shape[0]              # true batch
    Bp = p1_ref.shape[0] // 12      # sublane-padded batch (multiple of 8)

    # conv1 as im2col matmul: (12*Bp, 48) @ (48, 64) + bias, ReLU.
    # Rows are ordered (h, w, b); channels (64) stay on the lane dimension.
    y1 = jnp.dot(p1_ref[...], w1_ref[...], preferred_element_type=jnp.float32)
    y1 = jnp.maximum(y1 + b1_ref[...], 0.0)                 # (12*Bp, 64)

    # conv2 (3x3 valid on the 3x4 spatial grid -> 1x2) as 9 accumulated
    # channels-last tap matmuls: acc rows ordered (ow, b).
    acc = jnp.zeros((2 * Bp, 64), jnp.float32)
    for p in range(3):
        for q in range(3):
            start = (p * 4 + q) * Bp                         # sublane aligned
            acc = acc + jnp.dot(y1[start:start + 2 * Bp, :],
                                w2t_ref[p * 3 + q],
                                preferred_element_type=jnp.float32)
    y2 = jnp.maximum(acc + b2_ref[...], 0.0)                 # (2*Bp, 64)

    # Flatten (PyTorch NCHW channel-major) + fc, split by spatial position w.
    logits = (jnp.dot(y2[:Bp, :], wf_ref[0], preferred_element_type=jnp.float32)
              + jnp.dot(y2[Bp:2 * Bp, :], wf_ref[1],
                        preferred_element_type=jnp.float32)
              + bf_ref[...])                                 # (Bp, 7)
    logits = logits[:B, :]                                   # drop pad rows

    # Action mask (torch.where(actions > 0.5, 0, -10000)) + softmax.
    mask = jnp.where(a_ref[:, :7] > 0.5, 0.0, -10000.0)
    z = logits + mask
    z = z - jnp.max(z, axis=-1, keepdims=True)
    e = jnp.exp(z)
    o_ref[...] = e / jnp.sum(e, axis=-1, keepdims=True)


# ---------------------------------------------------------------------------
# Host-side glue
# ---------------------------------------------------------------------------
def _im2col_conv1(x, bp):
    """x: (B,3,6,7) NCHW -> (3*4*bp, 48) patch matrix.

    Rows ordered (h, w, b) with the batch axis zero-padded to `bp`;
    columns ordered (ci, p, q) to match w1.reshape(64, -1).T.
    """
    B, C, H, W = x.shape
    kh = kw = 4
    oh, ow = H - kh + 1, W - kw + 1
    taps = [x[:, :, p:p + oh, q:q + ow] for p in range(kh) for q in range(kw)]
    pat = jnp.stack(taps, axis=0).reshape(kh, kw, B, C, oh, ow)
    pat = pat.transpose(4, 5, 2, 3, 0, 1)                    # (oh, ow, B, C, kh, kw)
    pat = jnp.pad(pat, ((0, 0), (0, 0), (0, bp - B), (0, 0), (0, 0), (0, 0)))
    return pat.reshape(oh * ow * bp, C * kh * kw)


def prepare_params(params):
    """One-time (outside jit) weight relayout into kernel-friendly shapes."""
    w1, b1 = params["w1"], params["b1"]      # (64,3,4,4), (64,)
    w2, b2 = params["w2"], params["b2"]      # (64,64,3,3), (64,)
    wf, bf = params["wf"], params["bf"]      # (7,128), (7,)
    return {
        "w1m": jnp.asarray(w1, jnp.float32).reshape(64, -1).T,              # (48, 64)
        "b1m": jnp.asarray(b1, jnp.float32).reshape(1, 64),
        "w2t": jnp.asarray(w2, jnp.float32).transpose(2, 3, 1, 0)           # (3,3,ci,co)
                                            .reshape(9, 64, 64),            # [p*3+q, ci, co]
        "b2m": jnp.asarray(b2, jnp.float32).reshape(1, 64),
        "wfs": jnp.asarray(wf, jnp.float32).T.reshape(64, 2, 7)
                                            .transpose(1, 0, 2),            # [w, ci, n]
        "bfm": jnp.asarray(bf, jnp.float32).reshape(1, 7),
    }


def conv_model_forward(prepped, x, actions):
    x = x.astype(jnp.float32).reshape(-1, 3, 6, 7)
    B = x.shape[0]
    bp = ((B + 7) // 8) * 8                                  # pad batch to 8 sublanes
    p1 = _im2col_conv1(x, bp)                                # (12*bp, 48)
    actions = actions.astype(jnp.float32)                    # (B, 8); sliced in-kernel

    vmem = pl.BlockSpec(memory_space=pltpu.MemorySpace.VMEM)
    probs = pl.pallas_call(
        _fused_forward_kernel,
        out_shape=jax.ShapeDtypeStruct((B, 7), jnp.float32),
        in_specs=[vmem] * 8,
        out_specs=vmem,
    )(p1, prepped["w1m"], prepped["b1m"], prepped["w2t"], prepped["b2m"],
      prepped["wfs"], prepped["bfm"], actions)
    return probs


# ---------------------------------------------------------------------------
# Pure-JAX reference (mirrors the PyTorch forward) and test harness
# ---------------------------------------------------------------------------
def reference_forward(params, x, actions):
    w1, b1, w2, b2, wf, bf = (params[k] for k in ("w1", "b1", "w2", "b2", "wf", "bf"))
    x = x.astype(jnp.float32).reshape(-1, 3, 6, 7)
    dn = ("NCHW", "OIHW", "NCHW")
    y = lax.conv_general_dilated(x, w1, (1, 1), "VALID", dimension_numbers=dn)
    y = jnp.maximum(y + b1[None, :, None, None], 0.0)
    y = lax.conv_general_dilated(y, w2, (1, 1), "VALID", dimension_numbers=dn)
    y = jnp.maximum(y + b2[None, :, None, None], 0.0)
    feat = y.reshape(y.shape[0], -1)
    logits = feat @ wf.T + bf
    mask = jnp.where(actions[:, :-1] > 0.5, 0.0, -10000.0)
    return jax.nn.softmax(logits + mask, axis=-1)


def init_params(key):
    ks = jax.random.split(key, 6)
    scale = 0.1
    return {
        "w1": scale * jax.random.normal(ks[0], (64, 3, 4, 4), jnp.float32),
        "b1": scale * jax.random.normal(ks[1], (64,), jnp.float32),
        "w2": scale * jax.random.normal(ks[2], (64, 64, 3, 3), jnp.float32),
        "b2": scale * jax.random.normal(ks[3], (64,), jnp.float32),
        "wf": scale * jax.random.normal(ks[4], (7, 128), jnp.float32),
        "bf": scale * jax.random.normal(ks[5], (7,), jnp.float32),
    }


if __name__ == "__main__":
    key = jax.random.PRNGKey(0)
    kp, kx, ka = jax.random.split(key, 3)

    params = init_params(kp)
    prepped = prepare_params(params)          # one-time weight relayout (outside jit)

    B = 2
    x = jax.random.normal(kx, (B, 3, 6, 7), jnp.float32)           # board observation
    actions = jax.random.bernoulli(ka, 0.7, (B, 8)).astype(jnp.float32)
    actions = actions.at[:, 0].set(1.0)                             # at least one legal move

    fwd = jax.jit(conv_model_forward)
    probs = fwd(prepped, x, actions)
    jax.block_until_ready(probs)

    ref = reference_forward(params, x, actions)
    assert probs.shape == (B, 7)
    assert jnp.allclose(probs, ref, rtol=1e-4, atol=1e-5), (probs, ref)
    assert jnp.allclose(jnp.sum(probs, axis=-1), 1.0, atol=1e-5)

    print("KERNEL_OK")
</pallas_src>

<mosaic_0001>
module attributes {stable_mosaic.version = 11 : i64} {
  func.func @_fused_forward_kernel(%arg0: memref<96x48xf32, #tpu.memory_space<vmem>>, %arg1: memref<48x64xf32, #tpu.memory_space<vmem>>, %arg2: memref<1x64xf32, #tpu.memory_space<vmem>>, %arg3: memref<9x64x64xf32, #tpu.memory_space<vmem>>, %arg4: memref<1x64xf32, #tpu.memory_space<vmem>>, %arg5: memref<2x64x7xf32, #tpu.memory_space<vmem>>, %arg6: memref<1x7xf32, #tpu.memory_space<vmem>>, %arg7: memref<2x8xf32, #tpu.memory_space<vmem>>, %arg8: memref<2x7xf32, #tpu.memory_space<vmem>>) attributes {dimension_semantics = [], scalar_prefetch = 0 : i64, scratch_operands = 0 : i64, tpu.core_type = #tpu.core_type<tc>} {
    %c0 = arith.constant 0 : index
    %c0_0 = arith.constant 0 : index
    %0 = vector.load %arg0[%c0, %c0_0] : memref<96x48xf32, #tpu.memory_space<vmem>>, vector<96x48xf32>
    %c0_1 = arith.constant 0 : index
    %c0_2 = arith.constant 0 : index
    %1 = vector.load %arg1[%c0_1, %c0_2] : memref<48x64xf32, #tpu.memory_space<vmem>>, vector<48x64xf32>
    %cst = arith.constant dense<0.000000e+00> : vector<96x64xf32>
    %2 = tpu.matmul %0, %1, %cst {dimension_numbers = #tpu.dot_dimension_numbers<[1], [0], [0], [1], [0, 0, 1, 1], [], []>} : vector<96x48xf32>, vector<48x64xf32>, vector<96x64xf32> -> vector<96x64xf32>
    %c0_3 = arith.constant 0 : index
    %c0_4 = arith.constant 0 : index
    %3 = vector.load %arg2[%c0_3, %c0_4] : memref<1x64xf32, #tpu.memory_space<vmem>>, vector<1x64xf32>
    %4 = vector.broadcast %3 : vector<1x64xf32> to vector<96x64xf32>
    %5 = arith.addf %2, %4 : vector<96x64xf32>
    %cst_5 = arith.constant 0.000000e+00 : f32
    %6 = vector.broadcast %cst_5 : f32 to vector<96x64xf32>
    %7 = arith.maximumf %5, %6 : vector<96x64xf32>
    %cst_6 = arith.constant 0.000000e+00 : f32
    %8 = vector.broadcast %cst_6 : f32 to vector<16x64xf32>
    %9 = vector.extract_strided_slice %7 {offsets = [0, 0], sizes = [16, 64], strides = [1, 1]} : vector<96x64xf32> to vector<16x64xf32>
    %c0_7 = arith.constant 0 : index
    %c0_8 = arith.constant 0 : index
    %c0_9 = arith.constant 0 : index
    %10 = vector.load %arg3[%c0_7, %c0_8, %c0_9] : memref<9x64x64xf32, #tpu.memory_space<vmem>>, vector<1x64x64xf32>
    %11 = vector.shape_cast %10 : vector<1x64x64xf32> to vector<64x64xf32>
    %cst_10 = arith.constant dense<0.000000e+00> : vector<16x64xf32>
    %12 = tpu.matmul %9, %11, %cst_10 {dimension_numbers = #tpu.dot_dimension_numbers<[1], [0], [0], [1], [0, 0, 1, 1], [], []>} : vector<16x64xf32>, vector<64x64xf32>, vector<16x64xf32> -> vector<16x64xf32>
    %13 = arith.addf %8, %12 : vector<16x64xf32>
    %14 = vector.extract_strided_slice %7 {offsets = [8, 0], sizes = [16, 64], strides = [1, 1]} : vector<96x64xf32> to vector<16x64xf32>
    %c1 = arith.constant 1 : index
    %c0_11 = arith.constant 0 : index
    %c0_12 = arith.constant 0 : index
    %15 = vector.load %arg3[%c1, %c0_11, %c0_12] : memref<9x64x64xf32, #tpu.memory_space<vmem>>, vector<1x64x64xf32>
    %16 = vector.shape_cast %15 : vector<1x64x64xf32> to vector<64x64xf32>
    %cst_13 = arith.constant dense<0.000000e+00> : vector<16x64xf32>
    %17 = tpu.matmul %14, %16, %cst_13 {dimension_numbers = #tpu.dot_dimension_numbers<[1], [0], [0], [1], [0, 0, 1, 1], [], []>} : vector<16x64xf32>, vector<64x64xf32>, vector<16x64xf32> -> vector<16x64xf32>
    %18 = arith.addf %13, %17 : vector<16x64xf32>
    %19 = vector.extract_strided_slice %7 {offsets = [16, 0], sizes = [16, 64], strides = [1, 1]} : vector<96x64xf32> to vector<16x64xf32>
    %c2 = arith.constant 2 : index
    %c0_14 = arith.constant 0 : index
    %c0_15 = arith.constant 0 : index
    %20 = vector.load %arg3[%c2, %c0_14, %c0_15] : memref<9x64x64xf32, #tpu.memory_space<vmem>>, vector<1x64x64xf32>
    %21 = vector.shape_cast %20 : vector<1x64x64xf32> to vector<64x64xf32>
    %cst_16 = arith.constant dense<0.000000e+00> : vector<16x64xf32>
    %22 = tpu.matmul %19, %21, %cst_16 {dimension_numbers = #tpu.dot_dimension_numbers<[1], [0], [0], [1], [0, 0, 1, 1], [], []>} : vector<16x64xf32>, vector<64x64xf32>, vector<16x64xf32> -> vector<16x64xf32>
    %23 = arith.addf %18, %22 : vector<16x64xf32>
    %24 = vector.extract_strided_slice %7 {offsets = [32, 0], sizes = [16, 64], strides = [1, 1]} : vector<96x64xf32> to vector<16x64xf32>
    %c3 = arith.constant 3 : index
    %c0_17 = arith.constant 0 : index
    %c0_18 = arith.constant 0 : index
    %25 = vector.load %arg3[%c3, %c0_17, %c0_18] : memref<9x64x64xf32, #tpu.memory_space<vmem>>, vector<1x64x64xf32>
    %26 = vector.shape_cast %25 : vector<1x64x64xf32> to vector<64x64xf32>
    %cst_19 = arith.constant dense<0.000000e+00> : vector<16x64xf32>
    %27 = tpu.matmul %24, %26, %cst_19 {dimension_numbers = #tpu.dot_dimension_numbers<[1], [0], [0], [1], [0, 0, 1, 1], [], []>} : vector<16x64xf32>, vector<64x64xf32>, vector<16x64xf32> -> vector<16x64xf32>
    %28 = arith.addf %23, %27 : vector<16x64xf32>
    %29 = vector.extract_strided_slice %7 {offsets = [40, 0], sizes = [16, 64], strides = [1, 1]} : vector<96x64xf32> to vector<16x64xf32>
    %c4 = arith.constant 4 : index
    %c0_20 = arith.constant 0 : index
    %c0_21 = arith.constant 0 : index
    %30 = vector.load %arg3[%c4, %c0_20, %c0_21] : memref<9x64x64xf32, #tpu.memory_space<vmem>>, vector<1x64x64xf32>
    %31 = vector.shape_cast %30 : vector<1x64x64xf32> to vector<64x64xf32>
    %cst_22 = arith.constant dense<0.000000e+00> : vector<16x64xf32>
    %32 = tpu.matmul %29, %31, %cst_22 {dimension_numbers = #tpu.dot_dimension_numbers<[1], [0], [0], [1], [0, 0, 1, 1], [], []>} : vector<16x64xf32>, vector<64x64xf32>, vector<16x64xf32> -> vector<16x64xf32>
    %33 = arith.addf %28, %32 : vector<16x64xf32>
    %34 = vector.extract_strided_slice %7 {offsets = [48, 0], sizes = [16, 64], strides = [1, 1]} : vector<96x64xf32> to vector<16x64xf32>
    %c5 = arith.constant 5 : index
    %c0_23 = arith.constant 0 : index
    %c0_24 = arith.constant 0 : index
    %35 = vector.load %arg3[%c5, %c0_23, %c0_24] : memref<9x64x64xf32, #tpu.memory_space<vmem>>, vector<1x64x64xf32>
    %36 = vector.shape_cast %35 : vector<1x64x64xf32> to vector<64x64xf32>
    %cst_25 = arith.constant dense<0.000000e+00> : vector<16x64xf32>
    %37 = tpu.matmul %34, %36, %cst_25 {dimension_numbers = #tpu.dot_dimension_numbers<[1], [0], [0], [1], [0, 0, 1, 1], [], []>} : vector<16x64xf32>, vector<64x64xf32>, vector<16x64xf32> -> vector<16x64xf32>
    %38 = arith.addf %33, %37 : vector<16x64xf32>
    %39 = vector.extract_strided_slice %7 {offsets = [64, 0], sizes = [16, 64], strides = [1, 1]} : vector<96x64xf32> to vector<16x64xf32>
    %c6 = arith.constant 6 : index
    %c0_26 = arith.constant 0 : index
    %c0_27 = arith.constant 0 : index
    %40 = vector.load %arg3[%c6, %c0_26, %c0_27] : memref<9x64x64xf32, #tpu.memory_space<vmem>>, vector<1x64x64xf32>
    %41 = vector.shape_cast %40 : vector<1x64x64xf32> to vector<64x64xf32>
    %cst_28 = arith.constant dense<0.000000e+00> : vector<16x64xf32>
    %42 = tpu.matmul %39, %41, %cst_28 {dimension_numbers = #tpu.dot_dimension_numbers<[1], [0], [0], [1], [0, 0, 1, 1], [], []>} : vector<16x64xf32>, vector<64x64xf32>, vector<16x64xf32> -> vector<16x64xf32>
    %43 = arith.addf %38, %42 : vector<16x64xf32>
    %44 = vector.extract_strided_slice %7 {offsets = [72, 0], sizes = [16, 64], strides = [1, 1]} : vector<96x64xf32> to vector<16x64xf32>
    %c7 = arith.constant 7 : index
    %c0_29 = arith.constant 0 : index
    %c0_30 = arith.constant 0 : index
    %45 = vector.load %arg3[%c7, %c0_29, %c0_30] : memref<9x64x64xf32, #tpu.memory_space<vmem>>, vector<1x64x64xf32>
    %46 = vector.shape_cast %45 : vector<1x64x64xf32> to vector<64x64xf32>
    %cst_31 = arith.constant dense<0.000000e+00> : vector<16x64xf32>
    %47 = tpu.matmul %44, %46, %cst_31 {dimension_numbers = #tpu.dot_dimension_numbers<[1], [0], [0], [1], [0, 0, 1, 1], [], []>} : vector<16x64xf32>, vector<64x64xf32>, vector<16x64xf32> -> vector<16x64xf32>
    %48 = arith.addf %43, %47 : vector<16x64xf32>
    %49 = vector.extract_strided_slice %7 {offsets = [80, 0], sizes = [16, 64], strides = [1, 1]} : vector<96x64xf32> to vector<16x64xf32>
    %c8 = arith.constant 8 : index
    %c0_32 = arith.constant 0 : index
    %c0_33 = arith.constant 0 : index
    %50 = vector.load %arg3[%c8, %c0_32, %c0_33] : memref<9x64x64xf32, #tpu.memory_space<vmem>>, vector<1x64x64xf32>
    %51 = vector.shape_cast %50 : vector<1x64x64xf32> to vector<64x64xf32>
    %cst_34 = arith.constant dense<0.000000e+00> : vector<16x64xf32>
    %52 = tpu.matmul %49, %51, %cst_34 {dimension_numbers = #tpu.dot_dimension_numbers<[1], [0], [0], [1], [0, 0, 1, 1], [], []>} : vector<16x64xf32>, vector<64x64xf32>, vector<16x64xf32> -> vector<16x64xf32>
    %53 = arith.addf %48, %52 : vector<16x64xf32>
    %c0_35 = arith.constant 0 : index
    %c0_36 = arith.constant 0 : index
    %54 = vector.load %arg4[%c0_35, %c0_36] : memref<1x64xf32, #tpu.memory_space<vmem>>, vector<1x64xf32>
    %55 = vector.broadcast %54 : vector<1x64xf32> to vector<16x64xf32>
    %56 = arith.addf %53, %55 : vector<16x64xf32>
    %cst_37 = arith.constant 0.000000e+00 : f32
    %57 = vector.broadcast %cst_37 : f32 to vector<16x64xf32>
    %58 = arith.maximumf %56, %57 : vector<16x64xf32>
    %59 = vector.extract_strided_slice %58 {offsets = [0, 0], sizes = [8, 64], strides = [1, 1]} : vector<16x64xf32> to vector<8x64xf32>
    %c0_38 = arith.constant 0 : index
    %c0_39 = arith.constant 0 : index
    %c0_40 = arith.constant 0 : index
    %60 = vector.load %arg5[%c0_38, %c0_39, %c0_40] : memref<2x64x7xf32, #tpu.memory_space<vmem>>, vector<1x64x7xf32>
    %61 = vector.shape_cast %60 : vector<1x64x7xf32> to vector<64x7xf32>
    %cst_41 = arith.constant dense<0.000000e+00> : vector<8x7xf32>
    %62 = tpu.matmul %59, %61, %cst_41 {dimension_numbers = #tpu.dot_dimension_numbers<[1], [0], [0], [1], [0, 0, 1, 1], [], []>} : vector<8x64xf32>, vector<64x7xf32>, vector<8x7xf32> -> vector<8x7xf32>
    %63 = vector.extract_strided_slice %58 {offsets = [8, 0], sizes = [8, 64], strides = [1, 1]} : vector<16x64xf32> to vector<8x64xf32>
    %c1_42 = arith.constant 1 : index
    %c0_43 = arith.constant 0 : index
    %c0_44 = arith.constant 0 : index
    %64 = vector.load %arg5[%c1_42, %c0_43, %c0_44] : memref<2x64x7xf32, #tpu.memory_space<vmem>>, vector<1x64x7xf32>
    %65 = vector.shape_cast %64 : vector<1x64x7xf32> to vector<64x7xf32>
    %cst_45 = arith.constant dense<0.000000e+00> : vector<8x7xf32>
    %66 = tpu.matmul %63, %65, %cst_45 {dimension_numbers = #tpu.dot_dimension_numbers<[1], [0], [0], [1], [0, 0, 1, 1], [], []>} : vector<8x64xf32>, vector<64x7xf32>, vector<8x7xf32> -> vector<8x7xf32>
    %67 = arith.addf %62, %66 : vector<8x7xf32>
    %c0_46 = arith.constant 0 : index
    %c0_47 = arith.constant 0 : index
    %68 = vector.load %arg6[%c0_46, %c0_47] : memref<1x7xf32, #tpu.memory_space<vmem>>, vector<1x7xf32>
    %69 = vector.broadcast %68 : vector<1x7xf32> to vector<8x7xf32>
    %70 = arith.addf %67, %69 : vector<8x7xf32>
    %71 = vector.extract_strided_slice %70 {offsets = [0, 0], sizes = [2, 7], strides = [1, 1]} : vector<8x7xf32> to vector<2x7xf32>
    %c0_48 = arith.constant 0 : index
    %c0_49 = arith.constant 0 : index
    %72 = vector.load %arg7[%c0_48, %c0_49] : memref<2x8xf32, #tpu.memory_space<vmem>>, vector<2x7xf32>
    %cst_50 = arith.constant 5.000000e-01 : f32
    %73 = vector.broadcast %cst_50 : f32 to vector<2x7xf32>
    %74 = arith.cmpf ogt, %72, %73 : vector<2x7xf32>
    %cst_51 = arith.constant 0.000000e+00 : f32
    %cst_52 = arith.constant -1.000000e+04 : f32
    %75 = vector.broadcast %cst_51 : f32 to vector<2x7xf32>
    %76 = vector.broadcast %cst_52 : f32 to vector<2x7xf32>
    %77 = arith.select %74, %75, %76 : vector<2x7xi1>, vector<2x7xf32>
    %78 = arith.addf %71, %77 : vector<2x7xf32>
    %cst_53 = arith.constant dense<0xFF800000> : vector<2xf32>
    %79 = vector.multi_reduction <maximumf>, %78, %cst_53 [1] : vector<2x7xf32> to vector<2xf32>
    %80 = vector.shape_cast %79 : vector<2xf32> to vector<2x1xf32>
    %81 = vector.broadcast %80 : vector<2x1xf32> to vector<2x7xf32>
    %82 = arith.subf %78, %81 : vector<2x7xf32>
    %83 = math.exp %82 : vector<2x7xf32>
    %cst_54 = arith.constant dense<0.000000e+00> : vector<2xf32>
    %84 = vector.multi_reduction <add>, %83, %cst_54 [1] : vector<2x7xf32> to vector<2xf32>
    %85 = vector.shape_cast %84 : vector<2xf32> to vector<2x1xf32>
    %86 = vector.broadcast %85 : vector<2x1xf32> to vector<2x7xf32>
    %87 = arith.divf %83, %86 : vector<2x7xf32>
    %c0_55 = arith.constant 0 : index
    %c0_56 = arith.constant 0 : index
    %88 = vector.load %arg8[%c0_55, %c0_56] : memref<2x7xf32, #tpu.memory_space<vmem>>, vector<2x7xf32>
    tpu.vector_store %arg8[%c0_55, %c0_56], %87 {strides = array<i32>} : memref<2x7xf32, #tpu.memory_space<vmem>>, vector<2x7xf32>,
    return
  }
}

</mosaic_0001>

<llo_original>
// kernel: conv_model_forward.1
$region0: #{conv_model_forward.1}
  #allocation0 [shape = 'u32[]', space=smem, size = 0x4, offset = 0x4, fixed_abs, tag = 'smem constant byte address 0x4 - core index']
  #allocation1 [shape = 'u32[144,128]{1,0:T(1,128)}', space=vmem, size = 0x12000, scoped, tag = 'internal scratch']
  %s0 = inlined_call_operand.vmem [shape: f32[96,48], index: 0, kind: input, shape index: {}]
  %s1 = inlined_call_operand.vmem [shape: f32[48,64], index: 1, kind: input, shape index: {}]
  %s2 = inlined_call_operand.vmem [shape: f32[1,64], index: 2, kind: input, shape index: {}]
  %s3 = inlined_call_operand.vmem [shape: f32[9,64,64], index: 3, kind: input, shape index: {}]
  %s4 = inlined_call_operand.vmem [shape: f32[1,64], index: 4, kind: input, shape index: {}]
  %s5 = inlined_call_operand.vmem [shape: f32[2,64,7], index: 5, kind: input, shape index: {}]
  %s6 = inlined_call_operand.vmem [shape: f32[1,7], index: 6, kind: input, shape index: {}]
  %s7 = inlined_call_operand.vmem [shape: f32[2,8], index: 7, kind: input, shape index: {}]
  %s8 = inlined_call_operand.hbm [shape: f32[2,7], index: 8, kind: output, shape index: {}]
  %s9 = sld [smem:[#allocation0]]
  $region42: #{conv_model_forward.1} parent=0
    _
  %s11 = ssub.s32 1, %s9
  %s12 = scalar_select 0, %s11, %s9
  $region1: #{conv_model_forward.1} parent=0
    #allocation2 [shape = 'u8[1024]{0}', space=vmem, size = 0x400, scoped, tag = 'output window, operand 0, single buffered']
    #allocation3 [shape = 's32[1]{0}', space=sflag, size = 0x4, scoped, tag = 'scoped memory for conv_model_forward.1']
    %13 = vsyncpa [#allocation3], 0
    // Predicated region
    $region2: #{conv_model_forward.1} parent=1 // pred_check
      _
    $region3: #{conv_model_forward.1} parent=1 // pred_check_branch
      %15 = sbr.rel (0) target = $region5
    $region4: #{conv_model_forward.1} parent=1 // pred_region
      _
    $region5: #{conv_model_forward.1} parent=1 // pred_fallthru
      _
    // Predicated region
    $region6: #{conv_model_forward.1} parent=1 // pred_check
      _
    $region7: #{conv_model_forward.1} parent=1 // pred_check_branch
      %17 = sbr.rel (0) target = $region9
    $region8: #{conv_model_forward.1} parent=1 // pred_region
      _
    $region9: #{conv_model_forward.1} parent=1 // pred_fallthru
      _
    // Predicated region
    $region10: #{conv_model_forward.1} parent=1 // pred_check
      _
    $region11: #{conv_model_forward.1} parent=1 // pred_check_branch
      %19 = sbr.rel (0) target = $region13
    $region12: #{conv_model_forward.1} parent=1 // pred_region
      _
    $region13: #{conv_model_forward.1} parent=1 // pred_fallthru
      _
    // Predicated region
    $region14: #{conv_model_forward.1} parent=1 // pred_check
      _
    $region15: #{conv_model_forward.1} parent=1 // pred_check_branch
      %21 = sbr.rel (0) target = $region17
    $region16: #{conv_model_forward.1} parent=1 // pred_region
      _
    $region17: #{conv_model_forward.1} parent=1 // pred_fallthru
      _
    // Predicated region
    $region18: #{conv_model_forward.1} parent=1 // pred_check
      _
    $region19: #{conv_model_forward.1} parent=1 // pred_check_branch
      %23 = sbr.rel (0) target = $region21
    $region20: #{conv_model_forward.1} parent=1 // pred_region
      _
    $region21: #{conv_model_forward.1} parent=1 // pred_fallthru
      _
    // Predicated region
    $region22: #{conv_model_forward.1} parent=1 // pred_check
      _
    $region23: #{conv_model_forward.1} parent=1 // pred_check_branch
      %25 = sbr.rel (0) target = $region25
    $region24: #{conv_model_forward.1} parent=1 // pred_region
      _
    $region25: #{conv_model_forward.1} parent=1 // pred_fallthru
      _
    // Predicated region
    $region26: #{conv_model_forward.1} parent=1 // pred_check
      _
    $region27: #{conv_model_forward.1} parent=1 // pred_check_branch
      %27 = sbr.rel (0) target = $region29
    $region28: #{conv_model_forward.1} parent=1 // pred_region
      _
    $region29: #{conv_model_forward.1} parent=1 // pred_fallthru
      _
    // Predicated region
    $region30: #{conv_model_forward.1} parent=1 // pred_check
      _
    $region31: #{conv_model_forward.1} parent=1 // pred_check_branch
      %29 = sbr.rel (0) target = $region33
    $region32: #{conv_model_forward.1} parent=1 // pred_region
      _
    $region33: #{conv_model_forward.1} parent=1 // pred_fallthru
      _
    %v30 = vld [vmem:[%s0] sm:$0xff]
    %v31 = vld [vmem:[%s0 + $0x8] sm:$0xff]
    %v32 = vld [vmem:[%s0 + $0x10] sm:$0xff]
    %v33 = vld [vmem:[%s0 + $0x18] sm:$0xff]
    %v34 = vld [vmem:[%s0 + $0x20] sm:$0xff]
    %v35 = vld [vmem:[%s0 + $0x28] sm:$0xff]
    %v36 = vld [vmem:[%s0 + $0x30] sm:$0xff]
    %v37 = vld [vmem:[%s0 + $0x38] sm:$0xff]
    %v38 = vld [vmem:[%s0 + $0x40] sm:$0xff]
    %v39 = vld [vmem:[%s0 + $0x48] sm:$0xff]
    %v40 = vld [vmem:[%s0 + $0x50] sm:$0xff]
    %v41 = vld [vmem:[%s0 + $0x58] sm:$0xff]
    %v42 = vld [vmem:[%s1] sm:$0xff]
    %v43 = vld [vmem:[%s1 + $0x8] sm:$0xff]
    %v44 = vld [vmem:[%s1 + $0x10] sm:$0xff]
    %v45 = vld [vmem:[%s1 + $0x18] sm:$0xff]
    %v46 = vld [vmem:[%s1 + $0x20] sm:$0xff]
    %v47 = vld [vmem:[%s1 + $0x28] sm:$0xff]
    %v48 = vld [vmem:[%s2] sm:$0x1]
    %v50 = vlaneseq
    %v51 = vshrl.u32 %v50, 7
    %v52 = vsub.s32 0, %v51
    %v53 = vrot.slane %v48, %v52
    %vm55 = vcmask 392192
    %v57 = vsel %vm55, %v30, 0
    %v60 = vsel %vm55, %v31, 0
    %v63 = vsel %vm55, %v32, 0
    %v66 = vsel %vm55, %v33, 0
    %v69 = vsel %vm55, %v34, 0
    %v72 = vsel %vm55, %v35, 0
    %v75 = vsel %vm55, %v36, 0
    %v78 = vsel %vm55, %v37, 0
    %v81 = vsel %vm55, %v38, 0
    %v84 = vsel %vm55, %v39, 0
    %v87 = vsel %vm55, %v40, 0
    %v90 = vsel %vm55, %v41, 0
    %92 = vmatprep.subr.mxu0 0.0
    %93 = vmatpush1.msra.mxu0 0.0
    %94 = vmatprep.subr.mxu0 0.0
    %95 = vmatpush1.msra.mxu0 0.0
    %96 = vmatprep.subr.mxu0 0.0
    %97 = vmatpush1.msra.mxu0 0.0
    %98 = vmatprep.subr.mxu0 0.0
    %99 = vmatpush1.msra.mxu0 0.0
    %100 = vmatprep.subr.mxu0 0.0
    %101 = vmatpush1.msra.mxu0 0.0
    %102 = vmatprep.subr.mxu0 0.0
    %103 = vmatpush1.msra.mxu0 0.0
    %104 = vmatprep.subr.mxu0 0.0
    %105 = vmatpush1.msra.mxu0 0.0
    %106 = vmatprep.subr.mxu0 0.0
    %107 = vmatpush1.msra.mxu0 0.0
    %108 = vmatprep.subr.mxu0 0.0
    %109 = vmatpush1.msra.mxu0 0.0
    %110 = vmatprep.subr.mxu0 0.0
    %111 = vmatpush1.msra.mxu0 0.0
    %112 = vmatprep.subr.mxu0 0.0
    %113 = vmatpush1.msra.mxu0 %v47
    %114 = vmatprep.subr.mxu0 0.0
    %115 = vmatpush1.msra.mxu0 %v46
    %116 = vmatprep.subr.mxu0 0.0
    %117 = vmatpush1.msra.mxu0 %v45
    %118 = vmatprep.subr.mxu0 0.0
    %119 = vmatpush1.msra.mxu0 %v44
    %120 = vmatprep.subr.mxu0 0.0
    %121 = vmatpush1.msra.mxu0 %v43
    %122 = vmatprep.subr.mxu0 0.0
    %123 = vmatpush1.msra.mxu0 %v42
    %124 = vmatprep.subr.mxu0 0.0
    %125 = vmatpush2.msra.mxu0 0.0
    %126 = vmatprep.subr.mxu0 0.0
    %127 = vmatpush2.msra.mxu0 0.0
    %128 = vmatprep.subr.mxu0 0.0
    %129 = vmatpush2.msra.mxu0 0.0
    %130 = vmatprep.subr.mxu0 0.0
    %131 = vmatpush2.msra.mxu0 0.0
    %132 = vmatprep.subr.mxu0 0.0
    %133 = vmatpush2.msra.mxu0 0.0
    %134 = vmatprep.subr.mxu0 0.0
    %135 = vmatpush2.msra.mxu0 0.0
    %136 = vmatprep.subr.mxu0 0.0
    %137 = vmatpush2.msra.mxu0 0.0
    %138 = vmatprep.subr.mxu0 0.0
    %139 = vmatpush2.msra.mxu0 0.0
    %140 = vmatprep.subr.mxu0 0.0
    %141 = vmatpush2.msra.mxu0 0.0
    %142 = vmatprep.subr.mxu0 0.0
    %143 = vmatpush2.msra.mxu0 0.0
    %144 = vmatprep.subr.mxu0 0.0
    %145 = vmatpush2.msra.mxu0 0.0
    %146 = vmatprep.subr.mxu0 0.0
    %147 = vmatpush2.msra.mxu0 0.0
    %148 = vmatprep.subr.mxu0 0.0
    %149 = vmatpush2.msra.mxu0 0.0
    %150 = vmatprep.subr.mxu0 0.0
    %151 = vmatpush2.msra.mxu0 0.0
    %152 = vmatprep.subr.mxu0 0.0
    %153 = vmatpush2.msra.mxu0 0.0
    %154 = vmatprep.subr.mxu0 0.0
    %155 = vmatpush2.msra.mxu0 0.0
    %156 = vmatprep.mubr.f32.mxu0 0.0
    %157 = vmatmul.mubr.f32.gmra.mxu0 %v57
    %v158 = vpop.f32.mrf.mxu0
    %v159 = vadd.f32 %v53, %v158
    %v160 = vpop.f32.mrf.mxu0
    %161 = vmatprep.mubr.f32.mxu0 0.0
    %162 = vmatmul.mubr.f32.gmra.mxu0 %v60
    %v163 = vpop.f32.mrf.mxu0
    %v164 = vadd.f32 %v53, %v163
    %v165 = vpop.f32.mrf.mxu0
    %166 = vmatprep.mubr.f32.mxu0 0.0
    %167 = vmatmul.mubr.f32.gmra.mxu0 %v63
    %v168 = vpop.f32.mrf.mxu0
    %v169 = vadd.f32 %v53, %v168
    %v170 = vpop.f32.mrf.mxu0
    %171 = vmatprep.mubr.f32.mxu0 0.0
    %172 = vmatmul.mubr.f32.gmra.mxu0 %v66
    %v173 = vpop.f32.mrf.mxu0
    %v174 = vadd.f32 %v53, %v173
    %v175 = vpop.f32.mrf.mxu0
    %176 = vmatprep.mubr.f32.mxu0 0.0
    %177 = vmatmul.mubr.f32.gmra.mxu0 %v69
    %v178 = vpop.f32.mrf.mxu0
    %v179 = vadd.f32 %v53, %v178
    %v180 = vpop.f32.mrf.mxu0
    %181 = vmatprep.mubr.f32.mxu0 0.0
    %182 = vmatmul.mubr.f32.gmra.mxu0 %v72
    %v183 = vpop.f32.mrf.mxu0
    %v184 = vadd.f32 %v53, %v183
    %v185 = vpop.f32.mrf.mxu0
    %186 = vmatprep.mubr.f32.mxu0 0.0
    %187 = vmatmul.mubr.f32.gmra.mxu0 %v75
    %v188 = vpop.f32.mrf.mxu0
    %v189 = vadd.f32 %v53, %v188
    %v190 = vpop.f32.mrf.mxu0
    %191 = vmatprep.mubr.f32.mxu0 0.0
    %192 = vmatmul.mubr.f32.gmra.mxu0 %v78
    %v193 = vpop.f32.mrf.mxu0
    %v194 = vadd.f32 %v53, %v193
    %v195 = vpop.f32.mrf.mxu0
    %196 = vmatprep.mubr.f32.mxu0 0.0
    %197 = vmatmul.mubr.f32.gmra.mxu0 %v81
    %v198 = vpop.f32.mrf.mxu0
    %v199 = vadd.f32 %v53, %v198
    %v200 = vpop.f32.mrf.mxu0
    %201 = vmatprep.mubr.f32.mxu0 0.0
    %202 = vmatmul.mubr.f32.gmra.mxu0 %v84
    %v203 = vpop.f32.mrf.mxu0
    %v204 = vadd.f32 %v53, %v203
    %v205 = vpop.f32.mrf.mxu0
    %206 = vmatprep.mubr.f32.mxu0 0.0
    %207 = vmatmul.mubr.f32.gmra.mxu0 %v87
    %v208 = vpop.f32.mrf.mxu0
    %v209 = vadd.f32 %v53, %v208
    %v210 = vpop.f32.mrf.mxu0
    %211 = vmatprep.mubr.f32.mxu0 0.0
    %212 = vmatmul.mubr.f32.gmra.mxu0 %v90
    %v213 = vpop.f32.mrf.mxu0
    %v214 = vadd.f32 %v53, %v213
    %v215 = vpop.f32.mrf.mxu0
    %216 = vdwg.mxu0
    %v217 = vmax.f32 %v159, 0.0
    %v218 = vmax.f32 %v164, 0.0
    %v219 = vmax.f32 %v169, 0.0
    %v220 = vmax.f32 %v174, 0.0
    %v221 = vmax.f32 %v179, 0.0
    %v222 = vmax.f32 %v184, 0.0
    %v223 = vmax.f32 %v189, 0.0
    %v224 = vmax.f32 %v194, 0.0
    %v225 = vmax.f32 %v199, 0.0
    %v226 = vmax.f32 %v204, 0.0
    %v227 = vmax.f32 %v209, 0.0
    %v228 = vmax.f32 %v214, 0.0
    %v229 = vld [vmem:[%s3] sm:$0xff]
    %v230 = vld [vmem:[%s3 + $0x8] sm:$0xff]
    %v231 = vld [vmem:[%s3 + $0x10] sm:$0xff]
    %v232 = vld [vmem:[%s3 + $0x18] sm:$0xff]
    %v233 = vld [vmem:[%s3 + $0x20] sm:$0xff]
    %v234 = vld [vmem:[%s3 + $0x28] sm:$0xff]
    %v235 = vld [vmem:[%s3 + $0x30] sm:$0xff]
    %v236 = vld [vmem:[%s3 + $0x38] sm:$0xff]
    %s237 = scalar_lea.vmem %s3, 64
    %v238 = vld [vmem:[%s237] sm:$0xff]
    %v239 = vld [vmem:[%s237 + $0x8] sm:$0xff]
    %v240 = vld [vmem:[%s237 + $0x10] sm:$0xff]
    %v241 = vld [vmem:[%s237 + $0x18] sm:$0xff]
    %v242 = vld [vmem:[%s237 + $0x20] sm:$0xff]
    %v243 = vld [vmem:[%s237 + $0x28] sm:$0xff]
    %v244 = vld [vmem:[%s237 + $0x30] sm:$0xff]
    %v245 = vld [vmem:[%s237 + $0x38] sm:$0xff]
    %vm246 = vcmask 523264
    %v248 = vsel %vm246, %v218, 0
    %v251 = vsel %vm246, %v219, 0
    %253 = vmatprep.subr.mxu0 0.0
    %254 = vmatpush1.msra.mxu0 0.0
    %255 = vmatprep.subr.mxu0 0.0
    %256 = vmatpush1.msra.mxu0 0.0
    %257 = vmatprep.subr.mxu0 0.0
    %258 = vmatpush1.msra.mxu0 0.0
    %259 = vmatprep.subr.mxu0 0.0
    %260 = vmatpush1.msra.mxu0 0.0
    %261 = vmatprep.subr.mxu0 0.0
    %262 = vmatpush1.msra.mxu0 0.0
    %263 = vmatprep.subr.mxu0 0.0
    %264 = vmatpush1.msra.mxu0 0.0
    %265 = vmatprep.subr.mxu0 0.0
    %266 = vmatpush1.msra.mxu0 0.0
    %267 = vmatprep.subr.mxu0 0.0
    %268 = vmatpush1.msra.mxu0 0.0
    %269 = vmatprep.subr.mxu0 0.0
    %270 = vmatpush1.msra.mxu0 %v245
    %271 = vmatprep.subr.mxu0 0.0
    %272 = vmatpush1.msra.mxu0 %v244
    %273 = vmatprep.subr.mxu0 0.0
    %274 = vmatpush1.msra.mxu0 %v243
    %275 = vmatprep.subr.mxu0 0.0
    %276 = vmatpush1.msra.mxu0 %v242
    %277 = vmatprep.subr.mxu0 0.0
    %278 = vmatpush1.msra.mxu0 %v241
    %279 = vmatprep.subr.mxu0 0.0
    %280 = vmatpush1.msra.mxu0 %v240
    %281 = vmatprep.subr.mxu0 0.0
    %282 = vmatpush1.msra.mxu0 %v239
    %283 = vmatprep.subr.mxu0 0.0
    %284 = vmatpush1.msra.mxu0 %v238
    %285 = vmatprep.subr.mxu0 0.0
    %286 = vmatpush2.msra.mxu0 0.0
    %287 = vmatprep.subr.mxu0 0.0
    %288 = vmatpush2.msra.mxu0 0.0
    %289 = vmatprep.subr.mxu0 0.0
    %290 = vmatpush2.msra.mxu0 0.0
    %291 = vmatprep.subr.mxu0 0.0
    %292 = vmatpush2.msra.mxu0 0.0
    %293 = vmatprep.subr.mxu0 0.0
    %294 = vmatpush2.msra.mxu0 0.0
    %295 = vmatprep.subr.mxu0 0.0
    %296 = vmatpush2.msra.mxu0 0.0
    %297 = vmatprep.subr.mxu0 0.0
    %298 = vmatpush2.msra.mxu0 0.0
    %299 = vmatprep.subr.mxu0 0.0
    %300 = vmatpush2.msra.mxu0 0.0
    %301 = vmatprep.subr.mxu0 0.0
    %302 = vmatpush2.msra.mxu0 0.0
    %303 = vmatprep.subr.mxu0 0.0
    %304 = vmatpush2.msra.mxu0 0.0
    %305 = vmatprep.subr.mxu0 0.0
    %306 = vmatpush2.msra.mxu0 0.0
    %307 = vmatprep.subr.mxu0 0.0
    %308 = vmatpush2.msra.mxu0 0.0
    %309 = vmatprep.subr.mxu0 0.0
    %310 = vmatpush2.msra.mxu0 0.0
    %311 = vmatprep.subr.mxu0 0.0
    %312 = vmatpush2.msra.mxu0 0.0
    %313 = vmatprep.subr.mxu0 0.0
    %314 = vmatpush2.msra.mxu0 0.0
    %315 = vmatprep.subr.mxu0 0.0
    %316 = vmatpush2.msra.mxu0 0.0
    %317 = vmatprep.mubr.f32.mxu0 0.0
    %318 = vmatmul.mubr.f32.gmra.mxu0 %v248
    %v319 = vpop.f32.mrf.mxu0
    %v320 = vadd.f32 0.0, %v319
    %v321 = vpop.f32.mrf.mxu0
    %322 = vmatprep.mubr.f32.mxu0 0.0
    %323 = vmatmul.mubr.f32.gmra.mxu0 %v251
    %v324 = vpop.f32.mrf.mxu0
    %v325 = vadd.f32 0.0, %v324
    %v326 = vpop.f32.mrf.mxu0
    %327 = vdwg.mxu0
    %v329 = vsel %vm246, %v217, 0
    %331 = vmatprep.subr.mxu0 0.0
    %332 = vmatpush1.msra.mxu0 0.0
    %333 = vmatprep.subr.mxu0 0.0
    %334 = vmatpush1.msra.mxu0 0.0
    %335 = vmatprep.subr.mxu0 0.0
    %336 = vmatpush1.msra.mxu0 0.0
    %337 = vmatprep.subr.mxu0 0.0
    %338 = vmatpush1.msra.mxu0 0.0
    %339 = vmatprep.subr.mxu0 0.0
    %340 = vmatpush1.msra.mxu0 0.0
    %341 = vmatprep.subr.mxu0 0.0
    %342 = vmatpush1.msra.mxu0 0.0
    %343 = vmatprep.subr.mxu0 0.0
    %344 = vmatpush1.msra.mxu0 0.0
    %345 = vmatprep.subr.mxu0 0.0
    %346 = vmatpush1.msra.mxu0 0.0
    %347 = vmatprep.subr.mxu0 0.0
    %348 = vmatpush1.msra.mxu0 %v236
    %349 = vmatprep.subr.mxu0 0.0
    %350 = vmatpush1.msra.mxu0 %v235
    %351 = vmatprep.subr.mxu0 0.0
    %352 = vmatpush1.msra.mxu0 %v234
    %353 = vmatprep.subr.mxu0 0.0
    %354 = vmatpush1.msra.mxu0 %v233
    %355 = vmatprep.subr.mxu0 0.0
    %356 = vmatpush1.msra.mxu0 %v232
    %357 = vmatprep.subr.mxu0 0.0
    %358 = vmatpush1.msra.mxu0 %v231
    %359 = vmatprep.subr.mxu0 0.0
    %360 = vmatpush1.msra.mxu0 %v230
    %361 = vmatprep.subr.mxu0 0.0
    %362 = vmatpush1.msra.mxu0 %v229
    %363 = vmatprep.subr.mxu0 0.0
    %364 = vmatpush2.msra.mxu0 0.0
    %365 = vmatprep.subr.mxu0 0.0
    %366 = vmatpush2.msra.mxu0 0.0
    %367 = vmatprep.subr.mxu0 0.0
    %368 = vmatpush2.msra.mxu0 0.0
    %369 = vmatprep.subr.mxu0 0.0
    %370 = vmatpush2.msra.mxu0 0.0
    %371 = vmatprep.subr.mxu0 0.0
    %372 = vmatpush2.msra.mxu0 0.0
    %373 = vmatprep.subr.mxu0 0.0
    %374 = vmatpush2.msra.mxu0 0.0
    %375 = vmatprep.subr.mxu0 0.0
    %376 = vmatpush2.msra.mxu0 0.0
    %377 = vmatprep.subr.mxu0 0.0
    %378 = vmatpush2.msra.mxu0 0.0
    %379 = vmatprep.subr.mxu0 0.0
    %380 = vmatpush2.msra.mxu0 0.0
    %381 = vmatprep.subr.mxu0 0.0
    %382 = vmatpush2.msra.mxu0 0.0
    %383 = vmatprep.subr.mxu0 0.0
    %384 = vmatpush2.msra.mxu0 0.0
    %385 = vmatprep.subr.mxu0 0.0
    %386 = vmatpush2.msra.mxu0 0.0
    %387 = vmatprep.subr.mxu0 0.0
    %388 = vmatpush2.msra.mxu0 0.0
    %389 = vmatprep.subr.mxu0 0.0
    %390 = vmatpush2.msra.mxu0 0.0
    %391 = vmatprep.subr.mxu0 0.0
    %392 = vmatpush2.msra.mxu0 0.0
    %393 = vmatprep.subr.mxu0 0.0
    %394 = vmatpush2.msra.mxu0 0.0
    %395 = vmatprep.mubr.f32.mxu0 0.0
    %396 = vmatmul.mubr.f32.gmra.mxu0 %v329
    %v397 = vpop.f32.mrf.mxu0
    %v398 = vadd.f32 %v320, %v397
    %v399 = vpop.f32.mrf.mxu0
    %400 = vmatprep.mubr.f32.mxu0 0.0
    %401 = vmatmul.mubr.f32.gmra.mxu0 %v248
    %v402 = vpop.f32.mrf.mxu0
    %v403 = vadd.f32 %v325, %v402
    %v404 = vpop.f32.mrf.mxu0
    %405 = vdwg.mxu0
    %s406 = scalar_lea.vmem %s3, 128
    %v407 = vld [vmem:[%s406] sm:$0xff]
    %v408 = vld [vmem:[%s406 + $0x8] sm:$0xff]
    %v409 = vld [vmem:[%s406 + $0x10] sm:$0xff]
    %v410 = vld [vmem:[%s406 + $0x18] sm:$0xff]
    %v411 = vld [vmem:[%s406 + $0x20] sm:$0xff]
    %v412 = vld [vmem:[%s406 + $0x28] sm:$0xff]
    %v413 = vld [vmem:[%s406 + $0x30] sm:$0xff]
    %v414 = vld [vmem:[%s406 + $0x38] sm:$0xff]
    %v416 = vsel %vm246, %v220, 0
    %418 = vmatprep.subr.mxu0 0.0
    %419 = vmatpush1.msra.mxu0 0.0
    %420 = vmatprep.subr.mxu0 0.0
    %421 = vmatpush1.msra.mxu0 0.0
    %422 = vmatprep.subr.mxu0 0.0
    %423 = vmatpush1.msra.mxu0 0.0
    %424 = vmatprep.subr.mxu0 0.0
    %425 = vmatpush1.msra.mxu0 0.0
    %426 = vmatprep.subr.mxu0 0.0
    %427 = vmatpush1.msra.mxu0 0.0
    %428 = vmatprep.subr.mxu0 0.0
    %429 = vmatpush1.msra.mxu0 0.0
    %430 = vmatprep.subr.mxu0 0.0
    %431 = vmatpush1.msra.mxu0 0.0
    %432 = vmatprep.subr.mxu0 0.0
    %433 = vmatpush1.msra.mxu0 0.0
    %434 = vmatprep.subr.mxu0 0.0
    %435 = vmatpush1.msra.mxu0 %v414
    %436 = vmatprep.subr.mxu0 0.0
    %437 = vmatpush1.msra.mxu0 %v413
    %438 = vmatprep.subr.mxu0 0.0
    %439 = vmatpush1.msra.mxu0 %v412
    %440 = vmatprep.subr.mxu0 0.0
    %441 = vmatpush1.msra.mxu0 %v411
    %442 = vmatprep.subr.mxu0 0.0
    %443 = vmatpush1.msra.mxu0 %v410
    %444 = vmatprep.subr.mxu0 0.0
    %445 = vmatpush1.msra.mxu0 %v409
    %446 = vmatprep.subr.mxu0 0.0
    %447 = vmatpush1.msra.mxu0 %v408
    %448 = vmatprep.subr.mxu0 0.0
    %449 = vmatpush1.msra.mxu0 %v407
    %450 = vmatprep.subr.mxu0 0.0
    %451 = vmatpush2.msra.mxu0 0.0
    %452 = vmatprep.subr.mxu0 0.0
    %453 = vmatpush2.msra.mxu0 0.0
    %454 = vmatprep.subr.mxu0 0.0
    %455 = vmatpush2.msra.mxu0 0.0
    %456 = vmatprep.subr.mxu0 0.0
    %457 = vmatpush2.msra.mxu0 0.0
    %458 = vmatprep.subr.mxu0 0.0
    %459 = vmatpush2.msra.mxu0 0.0
    %460 = vmatprep.subr.mxu0 0.0
    %461 = vmatpush2.msra.mxu0 0.0
    %462 = vmatprep.subr.mxu0 0.0
    %463 = vmatpush2.msra.mxu0 0.0
    %464 = vmatprep.subr.mxu0 0.0
    %465 = vmatpush2.msra.mxu0 0.0
    %466 = vmatprep.subr.mxu0 0.0
    %467 = vmatpush2.msra.mxu0 0.0
    %468 = vmatprep.subr.mxu0 0.0
    %469 = vmatpush2.msra.mxu0 0.0
    %470 = vmatprep.subr.mxu0 0.0
    %471 = vmatpush2.msra.mxu0 0.0
    %472 = vmatprep.subr.mxu0 0.0
    %473 = vmatpush2.msra.mxu0 0.0
    %474 = vmatprep.subr.mxu0 0.0
    %475 = vmatpush2.msra.mxu0 0.0
    %476 = vmatprep.subr.mxu0 0.0
    %477 = vmatpush2.msra.mxu0 0.0
    %478 = vmatprep.subr.mxu0 0.0
    %479 = vmatpush2.msra.mxu0 0.0
    %480 = vmatprep.subr.mxu0 0.0
    %481 = vmatpush2.msra.mxu0 0.0
    %482 = vmatprep.mubr.f32.mxu0 0.0
    %483 = vmatmul.mubr.f32.gmra.mxu0 %v251
    %v484 = vpop.f32.mrf.mxu0
    %v485 = vadd.f32 0.0, %v484
    %v486 = vpop.f32.mrf.mxu0
    %487 = vmatprep.mubr.f32.mxu0 0.0
    %488 = vmatmul.mubr.f32.gmra.mxu0 %v416
    %v489 = vpop.f32.mrf.mxu0
    %v490 = vadd.f32 0.0, %v489
    %v491 = vpop.f32.mrf.mxu0
    %492 = vdwg.mxu0
    %v493 = vadd.f32 %v398, %v485
    %v494 = vadd.f32 %v403, %v490
    %s495 = scalar_lea.vmem %s3, 192
    %v496 = vld [vmem:[%s495] sm:$0xff]
    %v497 = vld [vmem:[%s495 + $0x8] sm:$0xff]
    %v498 = vld [vmem:[%s495 + $0x10] sm:$0xff]
    %v499 = vld [vmem:[%s495 + $0x18] sm:$0xff]
    %v500 = vld [vmem:[%s495 + $0x20] sm:$0xff]
    %v501 = vld [vmem:[%s495 + $0x28] sm:$0xff]
    %v502 = vld [vmem:[%s495 + $0x30] sm:$0xff]
    %v503 = vld [vmem:[%s495 + $0x38] sm:$0xff]
    %v505 = vsel %vm246, %v221, 0
    %v508 = vsel %vm246, %v222, 0
    %510 = vmatprep.subr.mxu0 0.0
    %511 = vmatpush1.msra.mxu0 0.0
    %512 = vmatprep.subr.mxu0 0.0
    %513 = vmatpush1.msra.mxu0 0.0
    %514 = vmatprep.subr.mxu0 0.0
    %515 = vmatpush1.msra.mxu0 0.0
    %516 = vmatprep.subr.mxu0 0.0
    %517 = vmatpush1.msra.mxu0 0.0
    %518 = vmatprep.subr.mxu0 0.0
    %519 = vmatpush1.msra.mxu0 0.0
    %520 = vmatprep.subr.mxu0 0.0
    %521 = vmatpush1.msra.mxu0 0.0
    %522 = vmatprep.subr.mxu0 0.0
    %523 = vmatpush1.msra.mxu0 0.0
    %524 = vmatprep.subr.mxu0 0.0
    %525 = vmatpush1.msra.mxu0 0.0
    %526 = vmatprep.subr.mxu0 0.0
    %527 = vmatpush1.msra.mxu0 %v503
    %528 = vmatprep.subr.mxu0 0.0
    %529 = vmatpush1.msra.mxu0 %v502
    %530 = vmatprep.subr.mxu0 0.0
    %531 = vmatpush1.msra.mxu0 %v501
    %532 = vmatprep.subr.mxu0 0.0
    %533 = vmatpush1.msra.mxu0 %v500
    %534 = vmatprep.subr.mxu0 0.0
    %535 = vmatpush1.msra.mxu0 %v499
    %536 = vmatprep.subr.mxu0 0.0
    %537 = vmatpush1.msra.mxu0 %v498
    %538 = vmatprep.subr.mxu0 0.0
    %539 = vmatpush1.msra.mxu0 %v497
    %540 = vmatprep.subr.mxu0 0.0
    %541 = vmatpush1.msra.mxu0 %v496
    %542 = vmatprep.subr.mxu0 0.0
    %543 = vmatpush2.msra.mxu0 0.0
    %544 = vmatprep.subr.mxu0 0.0
    %545 = vmatpush2.msra.mxu0 0.0
    %546 = vmatprep.subr.mxu0 0.0
    %547 = vmatpush2.msra.mxu0 0.0
    %548 = vmatprep.subr.mxu0 0.0
    %549 = vmatpush2.msra.mxu0 0.0
    %550 = vmatprep.subr.mxu0 0.0
    %551 = vmatpush2.msra.mxu0 0.0
    %552 = vmatprep.subr.mxu0 0.0
    %553 = vmatpush2.msra.mxu0 0.0
    %554 = vmatprep.subr.mxu0 0.0
    %555 = vmatpush2.msra.mxu0 0.0
    %556 = vmatprep.subr.mxu0 0.0
    %557 = vmatpush2.msra.mxu0 0.0
    %558 = vmatprep.subr.mxu0 0.0
    %559 = vmatpush2.msra.mxu0 0.0
    %560 = vmatprep.subr.mxu0 0.0
    %561 = vmatpush2.msra.mxu0 0.0
    %562 = vmatprep.subr.mxu0 0.0
    %563 = vmatpush2.msra.mxu0 0.0
    %564 = vmatprep.subr.mxu0 0.0
    %565 = vmatpush2.msra.mxu0 0.0
    %566 = vmatprep.subr.mxu0 0.0
    %567 = vmatpush2.msra.mxu0 0.0
    %568 = vmatprep.subr.mxu0 0.0
    %569 = vmatpush2.msra.mxu0 0.0
    %570 = vmatprep.subr.mxu0 0.0
    %571 = vmatpush2.msra.mxu0 0.0
    %572 = vmatprep.subr.mxu0 0.0
    %573 = vmatpush2.msra.mxu0 0.0
    %574 = vmatprep.mubr.f32.mxu0 0.0
    %575 = vmatmul.mubr.f32.gmra.mxu0 %v505
    %v576 = vpop.f32.mrf.mxu0
    %v577 = vadd.f32 0.0, %v576
    %v578 = vpop.f32.mrf.mxu0
    %579 = vmatprep.mubr.f32.mxu0 0.0
    %580 = vmatmul.mubr.f32.gmra.mxu0 %v508
    %v581 = vpop.f32.mrf.mxu0
    %v582 = vadd.f32 0.0, %v581
    %v583 = vpop.f32.mrf.mxu0
    %584 = vdwg.mxu0
    %v585 = vadd.f32 %v493, %v577
    %v586 = vadd.f32 %v494, %v582
    %s587 = scalar_lea.vmem %s3, 256
    %v588 = vld [vmem:[%s587] sm:$0xff]
    %v589 = vld [vmem:[%s587 + $0x8] sm:$0xff]
    %v590 = vld [vmem:[%s587 + $0x10] sm:$0xff]
    %v591 = vld [vmem:[%s587 + $0x18] sm:$0xff]
    %v592 = vld [vmem:[%s587 + $0x20] sm:$0xff]
    %v593 = vld [vmem:[%s587 + $0x28] sm:$0xff]
    %v594 = vld [vmem:[%s587 + $0x30] sm:$0xff]
    %v595 = vld [vmem:[%s587 + $0x38] sm:$0xff]
    %v597 = vsel %vm246, %v223, 0
    %599 = vmatprep.subr.mxu0 0.0
    %600 = vmatpush1.msra.mxu0 0.0
    %601 = vmatprep.subr.mxu0 0.0
    %602 = vmatpush1.msra.mxu0 0.0
    %603 = vmatprep.subr.mxu0 0.0
    %604 = vmatpush1.msra.mxu0 0.0
    %605 = vmatprep.subr.mxu0 0.0
    %606 = vmatpush1.msra.mxu0 0.0
    %607 = vmatprep.subr.mxu0 0.0
    %608 = vmatpush1.msra.mxu0 0.0
    %609 = vmatprep.subr.mxu0 0.0
    %610 = vmatpush1.msra.mxu0 0.0
    %611 = vmatprep.subr.mxu0 0.0
    %612 = vmatpush1.msra.mxu0 0.0
    %613 = vmatprep.subr.mxu0 0.0
    %614 = vmatpush1.msra.mxu0 0.0
    %615 = vmatprep.subr.mxu0 0.0
    %616 = vmatpush1.msra.mxu0 %v595
    %617 = vmatprep.subr.mxu0 0.0
    %618 = vmatpush1.msra.mxu0 %v594
    %619 = vmatprep.subr.mxu0 0.0
    %620 = vmatpush1.msra.mxu0 %v593
    %621 = vmatprep.subr.mxu0 0.0
    %622 = vmatpush1.msra.mxu0 %v592
    %623 = vmatprep.subr.mxu0 0.0
    %624 = vmatpush1.msra.mxu0 %v591
    %625 = vmatprep.subr.mxu0 0.0
    %626 = vmatpush1.msra.mxu0 %v590
    %627 = vmatprep.subr.mxu0 0.0
    %628 = vmatpush1.msra.mxu0 %v589
    %629 = vmatprep.subr.mxu0 0.0
    %630 = vmatpush1.msra.mxu0 %v588
    %631 = vmatprep.subr.mxu0 0.0
    %632 = vmatpush2.msra.mxu0 0.0
    %633 = vmatprep.subr.mxu0 0.0
    %634 = vmatpush2.msra.mxu0 0.0
    %635 = vmatprep.subr.mxu0 0.0
    %636 = vmatpush2.msra.mxu0 0.0
    %637 = vmatprep.subr.mxu0 0.0
    %638 = vmatpush2.msra.mxu0 0.0
    %639 = vmatprep.subr.mxu0 0.0
    %640 = vmatpush2.msra.mxu0 0.0
    %641 = vmatprep.subr.mxu0 0.0
    %642 = vmatpush2.msra.mxu0 0.0
    %643 = vmatprep.subr.mxu0 0.0
    %644 = vmatpush2.msra.mxu0 0.0
    %645 = vmatprep.subr.mxu0 0.0
    %646 = vmatpush2.msra.mxu0 0.0
    %647 = vmatprep.subr.mxu0 0.0
    %648 = vmatpush2.msra.mxu0 0.0
    %649 = vmatprep.subr.mxu0 0.0
    %650 = vmatpush2.msra.mxu0 0.0
    %651 = vmatprep.subr.mxu0 0.0
    %652 = vmatpush2.msra.mxu0 0.0
    %653 = vmatprep.subr.mxu0 0.0
    %654 = vmatpush2.msra.mxu0 0.0
    %655 = vmatprep.subr.mxu0 0.0
    %656 = vmatpush2.msra.mxu0 0.0
    %657 = vmatprep.subr.mxu0 0.0
    %658 = vmatpush2.msra.mxu0 0.0
    %659 = vmatprep.subr.mxu0 0.0
    %660 = vmatpush2.msra.mxu0 0.0
    %661 = vmatprep.subr.mxu0 0.0
    %662 = vmatpush2.msra.mxu0 0.0
    %663 = vmatprep.mubr.f32.mxu0 0.0
    %664 = vmatmul.mubr.f32.gmra.mxu0 %v508
    %v665 = vpop.f32.mrf.mxu0
    %v666 = vadd.f32 0.0, %v665
    %v667 = vpop.f32.mrf.mxu0
    %668 = vmatprep.mubr.f32.mxu0 0.0
    %669 = vmatmul.mubr.f32.gmra.mxu0 %v597
    %v670 = vpop.f32.mrf.mxu0
    %v671 = vadd.f32 0.0, %v670
    %v672 = vpop.f32.mrf.mxu0
    %673 = vdwg.mxu0
    %v674 = vadd.f32 %v585, %v666
    %v675 = vadd.f32 %v586, %v671
    %s676 = scalar_lea.vmem %s3, 320
    %v677 = vld [vmem:[%s676] sm:$0xff]
    %v678 = vld [vmem:[%s676 + $0x8] sm:$0xff]
    %v679 = vld [vmem:[%s676 + $0x10] sm:$0xff]
    %v680 = vld [vmem:[%s676 + $0x18] sm:$0xff]
    %v681 = vld [vmem:[%s676 + $0x20] sm:$0xff]
    %v682 = vld [vmem:[%s676 + $0x28] sm:$0xff]
    %v683 = vld [vmem:[%s676 + $0x30] sm:$0xff]
    %v684 = vld [vmem:[%s676 + $0x38] sm:$0xff]
    %v686 = vsel %vm246, %v224, 0
    %688 = vmatprep.subr.mxu0 0.0
    %689 = vmatpush1.msra.mxu0 0.0
    %690 = vmatprep.subr.mxu0 0.0
    %691 = vmatpush1.msra.mxu0 0.0
    %692 = vmatprep.subr.mxu0 0.0
    %693 = vmatpush1.msra.mxu0 0.0
    %694 = vmatprep.subr.mxu0 0.0
    %695 = vmatpush1.msra.mxu0 0.0
    %696 = vmatprep.subr.mxu0 0.0
    %697 = vmatpush1.msra.mxu0 0.0
    %698 = vmatprep.subr.mxu0 0.0
    %699 = vmatpush1.msra.mxu0 0.0
    %700 = vmatprep.subr.mxu0 0.0
    %701 = vmatpush1.msra.mxu0 0.0
    %702 = vmatprep.subr.mxu0 0.0
    %703 = vmatpush1.msra.mxu0 0.0
    %704 = vmatprep.subr.mxu0 0.0
    %705 = vmatpush1.msra.mxu0 %v684
    %706 = vmatprep.subr.mxu0 0.0
    %707 = vmatpush1.msra.mxu0 %v683
    %708 = vmatprep.subr.mxu0 0.0
    %709 = vmatpush1.msra.mxu0 %v682
    %710 = vmatprep.subr.mxu0 0.0
    %711 = vmatpush1.msra.mxu0 %v681
    %712 = vmatprep.subr.mxu0 0.0
    %713 = vmatpush1.msra.mxu0 %v680
    %714 = vmatprep.subr.mxu0 0.0
    %715 = vmatpush1.msra.mxu0 %v679
    %716 = vmatprep.subr.mxu0 0.0
    %717 = vmatpush1.msra.mxu0 %v678
    %718 = vmatprep.subr.mxu0 0.0
    %719 = vmatpush1.msra.mxu0 %v677
    %720 = vmatprep.subr.mxu0 0.0
    %721 = vmatpush2.msra.mxu0 0.0
    %722 = vmatprep.subr.mxu0 0.0
    %723 = vmatpush2.msra.mxu0 0.0
    %724 = vmatprep.subr.mxu0 0.0
    %725 = vmatpush2.msra.mxu0 0.0
    %726 = vmatprep.subr.mxu0 0.0
    %727 = vmatpush2.msra.mxu0 0.0
    %728 = vmatprep.subr.mxu0 0.0
    %729 = vmatpush2.msra.mxu0 0.0
    %730 = vmatprep.subr.mxu0 0.0
    %731 = vmatpush2.msra.mxu0 0.0
    %732 = vmatprep.subr.mxu0 0.0
    %733 = vmatpush2.msra.mxu0 0.0
    %734 = vmatprep.subr.mxu0 0.0
    %735 = vmatpush2.msra.mxu0 0.0
    %736 = vmatprep.subr.mxu0 0.0
    %737 = vmatpush2.msra.mxu0 0.0
    %738 = vmatprep.subr.mxu0 0.0
    %739 = vmatpush2.msra.mxu0 0.0
    %740 = vmatprep.subr.mxu0 0.0
    %741 = vmatpush2.msra.mxu0 0.0
    %742 = vmatprep.subr.mxu0 0.0
    %743 = vmatpush2.msra.mxu0 0.0
    %744 = vmatprep.subr.mxu0 0.0
    %745 = vmatpush2.msra.mxu0 0.0
    %746 = vmatprep.subr.mxu0 0.0
    %747 = vmatpush2.msra.mxu0 0.0
    %748 = vmatprep.subr.mxu0 0.0
    %749 = vmatpush2.msra.mxu0 0.0
    %750 = vmatprep.subr.mxu0 0.0
    %751 = vmatpush2.msra.mxu0 0.0
    %752 = vmatprep.mubr.f32.mxu0 0.0
    %753 = vmatmul.mubr.f32.gmra.mxu0 %v597
    %v754 = vpop.f32.mrf.mxu0
    %v755 = vadd.f32 0.0, %v754
    %v756 = vpop.f32.mrf.mxu0
    %757 = vmatprep.mubr.f32.mxu0 0.0
    %758 = vmatmul.mubr.f32.gmra.mxu0 %v686
    %v759 = vpop.f32.mrf.mxu0
    %v760 = vadd.f32 0.0, %v759
    %v761 = vpop.f32.mrf.mxu0
    %762 = vdwg.mxu0
    %v763 = vadd.f32 %v674, %v755
    %v764 = vadd.f32 %v675, %v760
    %s765 = scalar_lea.vmem %s3, 384
    %v766 = vld [vmem:[%s765] sm:$0xff]
    %v767 = vld [vmem:[%s765 + $0x8] sm:$0xff]
    %v768 = vld [vmem:[%s765 + $0x10] sm:$0xff]
    %v769 = vld [vmem:[%s765 + $0x18] sm:$0xff]
    %v770 = vld [vmem:[%s765 + $0x20] sm:$0xff]
    %v771 = vld [vmem:[%s765 + $0x28] sm:$0xff]
    %v772 = vld [vmem:[%s765 + $0x30] sm:$0xff]
    %v773 = vld [vmem:[%s765 + $0x38] sm:$0xff]
    %v775 = vsel %vm246, %v225, 0
    %v778 = vsel %vm246, %v226, 0
    %780 = vmatprep.subr.mxu0 0.0
    %781 = vmatpush1.msra.mxu0 0.0
    %782 = vmatprep.subr.mxu0 0.0
    %783 = vmatpush1.msra.mxu0 0.0
    %784 = vmatprep.subr.mxu0 0.0
    %785 = vmatpush1.msra.mxu0 0.0
    %786 = vmatprep.subr.mxu0 0.0
    %787 = vmatpush1.msra.mxu0 0.0
    %788 = vmatprep.subr.mxu0 0.0
    %789 = vmatpush1.msra.mxu0 0.0
    %790 = vmatprep.subr.mxu0 0.0
    %791 = vmatpush1.msra.mxu0 0.0
    %792 = vmatprep.subr.mxu0 0.0
    %793 = vmatpush1.msra.mxu0 0.0
    %794 = vmatprep.subr.mxu0 0.0
    %795 = vmatpush1.msra.mxu0 0.0
    %796 = vmatprep.subr.mxu0 0.0
    %797 = vmatpush1.msra.mxu0 %v773
    %798 = vmatprep.subr.mxu0 0.0
    %799 = vmatpush1.msra.mxu0 %v772
    %800 = vmatprep.subr.mxu0 0.0
    %801 = vmatpush1.msra.mxu0 %v771
    %802 = vmatprep.subr.mxu0 0.0
    %803 = vmatpush1.msra.mxu0 %v770
    %804 = vmatprep.subr.mxu0 0.0
    %805 = vmatpush1.msra.mxu0 %v769
    %806 = vmatprep.subr.mxu0 0.0
    %807 = vmatpush1.msra.mxu0 %v768
    %808 = vmatprep.subr.mxu0 0.0
    %809 = vmatpush1.msra.mxu0 %v767
    %810 = vmatprep.subr.mxu0 0.0
    %811 = vmatpush1.msra.mxu0 %v766
    %812 = vmatprep.subr.mxu0 0.0
    %813 = vmatpush2.msra.mxu0 0.0
    %814 = vmatprep.subr.mxu0 0.0
    %815 = vmatpush2.msra.mxu0 0.0
    %816 = vmatprep.subr.mxu0 0.0
    %817 = vmatpush2.msra.mxu0 0.0
    %818 = vmatprep.subr.mxu0 0.0
    %819 = vmatpush2.msra.mxu0 0.0
    %820 = vmatprep.subr.mxu0 0.0
    %821 = vmatpush2.msra.mxu0 0.0
    %822 = vmatprep.subr.mxu0 0.0
    %823 = vmatpush2.msra.mxu0 0.0
    %824 = vmatprep.subr.mxu0 0.0
    %825 = vmatpush2.msra.mxu0 0.0
    %826 = vmatprep.subr.mxu0 0.0
    %827 = vmatpush2.msra.mxu0 0.0
    %828 = vmatprep.subr.mxu0 0.0
    %829 = vmatpush2.msra.mxu0 0.0
    %830 = vmatprep.subr.mxu0 0.0
    %831 = vmatpush2.msra.mxu0 0.0
    %832 = vmatprep.subr.mxu0 0.0
    %833 = vmatpush2.msra.mxu0 0.0
    %834 = vmatprep.subr.mxu0 0.0
    %835 = vmatpush2.msra.mxu0 0.0
    %836 = vmatprep.subr.mxu0 0.0
    %837 = vmatpush2.msra.mxu0 0.0
    %838 = vmatprep.subr.mxu0 0.0
    %839 = vmatpush2.msra.mxu0 0.0
    %840 = vmatprep.subr.mxu0 0.0
    %841 = vmatpush2.msra.mxu0 0.0
    %842 = vmatprep.subr.mxu0 0.0
    %843 = vmatpush2.msra.mxu0 0.0
    %844 = vmatprep.mubr.f32.mxu0 0.0
    %845 = vmatmul.mubr.f32.gmra.mxu0 %v775
    %v846 = vpop.f32.mrf.mxu0
    %v847 = vadd.f32 0.0, %v846
    %v848 = vpop.f32.mrf.mxu0
    %849 = vmatprep.mubr.f32.mxu0 0.0
    %850 = vmatmul.mubr.f32.gmra.mxu0 %v778
    %v851 = vpop.f32.mrf.mxu0
    %v852 = vadd.f32 0.0, %v851
    %v853 = vpop.f32.mrf.mxu0
    %854 = vdwg.mxu0
    %v855 = vadd.f32 %v763, %v847
    %v856 = vadd.f32 %v764, %v852
    %s857 = scalar_lea.vmem %s3, 448
    %v858 = vld [vmem:[%s857] sm:$0xff]
    %v859 = vld [vmem:[%s857 + $0x8] sm:$0xff]
    %v860 = vld [vmem:[%s857 + $0x10] sm:$0xff]
    %v861 = vld [vmem:[%s857 + $0x18] sm:$0xff]
    %v862 = vld [vmem:[%s857 + $0x20] sm:$0xff]
    %v863 = vld [vmem:[%s857 + $0x28] sm:$0xff]
    %v864 = vld [vmem:[%s857 + $0x30] sm:$0xff]
    %v865 = vld [vmem:[%s857 + $0x38] sm:$0xff]
    %v867 = vsel %vm246, %v227, 0
    %869 = vmatprep.subr.mxu0 0.0
    %870 = vmatpush1.msra.mxu0 0.0
    %871 = vmatprep.subr.mxu0 0.0
    %872 = vmatpush1.msra.mxu0 0.0
    %873 = vmatprep.subr.mxu0 0.0
    %874 = vmatpush1.msra.mxu0 0.0
    %875 = vmatprep.subr.mxu0 0.0
    %876 = vmatpush1.msra.mxu0 0.0
    %877 = vmatprep.subr.mxu0 0.0
    %878 = vmatpush1.msra.mxu0 0.0
    %879 = vmatprep.subr.mxu0 0.0
    %880 = vmatpush1.msra.mxu0 0.0
    %881 = vmatprep.subr.mxu0 0.0
    %882 = vmatpush1.msra.mxu0 0.0
    %883 = vmatprep.subr.mxu0 0.0
    %884 = vmatpush1.msra.mxu0 0.0
    %885 = vmatprep.subr.mxu0 0.0
    %886 = vmatpush1.msra.mxu0 %v865
    %887 = vmatprep.subr.mxu0 0.0
    %888 = vmatpush1.msra.mxu0 %v864
    %889 = vmatprep.subr.mxu0 0.0
    %890 = vmatpush1.msra.mxu0 %v863
    %891 = vmatprep.subr.mxu0 0.0
    %892 = vmatpush1.msra.mxu0 %v862
    %893 = vmatprep.subr.mxu0 0.0
    %894 = vmatpush1.msra.mxu0 %v861
    %895 = vmatprep.subr.mxu0 0.0
    %896 = vmatpush1.msra.mxu0 %v860
    %897 = vmatprep.subr.mxu0 0.0
    %898 = vmatpush1.msra.mxu0 %v859
    %899 = vmatprep.subr.mxu0 0.0
    %900 = vmatpush1.msra.mxu0 %v858
    %901 = vmatprep.subr.mxu0 0.0
    %902 = vmatpush2.msra.mxu0 0.0
    %903 = vmatprep.subr.mxu0 0.0
    %904 = vmatpush2.msra.mxu0 0.0
    %905 = vmatprep.subr.mxu0 0.0
    %906 = vmatpush2.msra.mxu0 0.0
    %907 = vmatprep.subr.mxu0 0.0
    %908 = vmatpush2.msra.mxu0 0.0
    %909 = vmatprep.subr.mxu0 0.0
    %910 = vmatpush2.msra.mxu0 0.0
    %911 = vmatprep.subr.mxu0 0.0
    %912 = vmatpush2.msra.mxu0 0.0
    %913 = vmatprep.subr.mxu0 0.0
    %914 = vmatpush2.msra.mxu0 0.0
    %915 = vmatprep.subr.mxu0 0.0
    %916 = vmatpush2.msra.mxu0 0.0
    %917 = vmatprep.subr.mxu0 0.0
    %918 = vmatpush2.msra.mxu0 0.0
    %919 = vmatprep.subr.mxu0 0.0
    %920 = vmatpush2.msra.mxu0 0.0
    %921 = vmatprep.subr.mxu0 0.0
    %922 = vmatpush2.msra.mxu0 0.0
    %923 = vmatprep.subr.mxu0 0.0
    %924 = vmatpush2.msra.mxu0 0.0
    %925 = vmatprep.subr.mxu0 0.0
    %926 = vmatpush2.msra.mxu0 0.0
    %927 = vmatprep.subr.mxu0 0.0
    %928 = vmatpush2.msra.mxu0 0.0
    %929 = vmatprep.subr.mxu0 0.0
    %930 = vmatpush2.msra.mxu0 0.0
    %931 = vmatprep.subr.mxu0 0.0
    %932 = vmatpush2.msra.mxu0 0.0
    %933 = vmatprep.mubr.f32.mxu0 0.0
    %934 = vmatmul.mubr.f32.gmra.mxu0 %v778
    %v935 = vpop.f32.mrf.mxu0
    %v936 = vadd.f32 0.0, %v935
    %v937 = vpop.f32.mrf.mxu0
    %938 = vmatprep.mubr.f32.mxu0 0.0
    %939 = vmatmul.mubr.f32.gmra.mxu0 %v867
    %v940 = vpop.f32.mrf.mxu0
    %v941 = vadd.f32 0.0, %v940
    %v942 = vpop.f32.mrf.mxu0
    %943 = vdwg.mxu0
    %v944 = vadd.f32 %v855, %v936
    %v945 = vadd.f32 %v856, %v941
    %s946 = scalar_lea.vmem %s3, 512
    %v947 = vld [vmem:[%s946] sm:$0xff]
    %v948 = vld [vmem:[%s946 + $0x8] sm:$0xff]
    %v949 = vld [vmem:[%s946 + $0x10] sm:$0xff]
    %v950 = vld [vmem:[%s946 + $0x18] sm:$0xff]
    %v951 = vld [vmem:[%s946 + $0x20] sm:$0xff]
    %v952 = vld [vmem:[%s946 + $0x28] sm:$0xff]
    %v953 = vld [vmem:[%s946 + $0x30] sm:$0xff]
    %v954 = vld [vmem:[%s946 + $0x38] sm:$0xff]
    %v956 = vsel %vm246, %v228, 0
    %958 = vmatprep.subr.mxu0 0.0
    %959 = vmatpush1.msra.mxu0 0.0
    %960 = vmatprep.subr.mxu0 0.0
    %961 = vmatpush1.msra.mxu0 0.0
    %962 = vmatprep.subr.mxu0 0.0
    %963 = vmatpush1.msra.mxu0 0.0
    %964 = vmatprep.subr.mxu0 0.0
    %965 = vmatpush1.msra.mxu0 0.0
    %966 = vmatprep.subr.mxu0 0.0
    %967 = vmatpush1.msra.mxu0 0.0
    %968 = vmatprep.subr.mxu0 0.0
    %969 = vmatpush1.msra.mxu0 0.0
    %970 = vmatprep.subr.mxu0 0.0
    %971 = vmatpush1.msra.mxu0 0.0
    %972 = vmatprep.subr.mxu0 0.0
    %973 = vmatpush1.msra.mxu0 0.0
    %974 = vmatprep.subr.mxu0 0.0
    %975 = vmatpush1.msra.mxu0 %v954
    %976 = vmatprep.subr.mxu0 0.0
    %977 = vmatpush1.msra.mxu0 %v953
    %978 = vmatprep.subr.mxu0 0.0
    %979 = vmatpush1.msra.mxu0 %v952
    %980 = vmatprep.subr.mxu0 0.0
    %981 = vmatpush1.msra.mxu0 %v951
    %982 = vmatprep.subr.mxu0 0.0
    %983 = vmatpush1.msra.mxu0 %v950
    %984 = vmatprep.subr.mxu0 0.0
    %985 = vmatpush1.msra.mxu0 %v949
    %986 = vmatprep.subr.mxu0 0.0
    %987 = vmatpush1.msra.mxu0 %v948
    %988 = vmatprep.subr.mxu0 0.0
    %989 = vmatpush1.msra.mxu0 %v947
    %990 = vmatprep.subr.mxu0 0.0
    %991 = vmatpush2.msra.mxu0 0.0
    %992 = vmatprep.subr.mxu0 0.0
    %993 = vmatpush2.msra.mxu0 0.0
    %994 = vmatprep.subr.mxu0 0.0
    %995 = vmatpush2.msra.mxu0 0.0
    %996 = vmatprep.subr.mxu0 0.0
    %997 = vmatpush2.msra.mxu0 0.0
    %998 = vmatprep.subr.mxu0 0.0
    %999 = vmatpush2.msra.mxu0 0.0
    %1000 = vmatprep.subr.mxu0 0.0
    %1001 = vmatpush2.msra.mxu0 0.0
    %1002 = vmatprep.subr.mxu0 0.0
    %1003 = vmatpush2.msra.mxu0 0.0
    %1004 = vmatprep.subr.mxu0 0.0
    %1005 = vmatpush2.msra.mxu0 0.0
    %1006 = vmatprep.subr.mxu0 0.0
    %1007 = vmatpush2.msra.mxu0 0.0
    %1008 = vmatprep.subr.mxu0 0.0
    %1009 = vmatpush2.msra.mxu0 0.0
    %1010 = vmatprep.subr.mxu0 0.0
    %1011 = vmatpush2.msra.mxu0 0.0
    %1012 = vmatprep.subr.mxu0 0.0
    %1013 = vmatpush2.msra.mxu0 0.0
    %1014 = vmatprep.subr.mxu0 0.0
    %1015 = vmatpush2.msra.mxu0 0.0
    %1016 = vmatprep.subr.mxu0 0.0
    %1017 = vmatpush2.msra.mxu0 0.0
    %1018 = vmatprep.subr.mxu0 0.0
    %1019 = vmatpush2.msra.mxu0 0.0
    %1020 = vmatprep.subr.mxu0 0.0
    %1021 = vmatpush2.msra.mxu0 0.0
    %1022 = vmatprep.mubr.f32.mxu0 0.0
    %1023 = vmatmul.mubr.f32.gmra.mxu0 %v867
    %v1024 = vpop.f32.mrf.mxu0
    %v1025 = vadd.f32 0.0, %v1024
    %v1026 = vpop.f32.mrf.mxu0
    %1027 = vmatprep.mubr.f32.mxu0 0.0
    %1028 = vmatmul.mubr.f32.gmra.mxu0 %v956
    %v1029 = vpop.f32.mrf.mxu0
    %v1030 = vadd.f32 0.0, %v1029
    %v1031 = vpop.f32.mrf.mxu0
    %1032 = vdwg.mxu0
    %v1033 = vadd.f32 %v944, %v1025
    %v1034 = vadd.f32 %v945, %v1030
    %v1035 = vld [vmem:[%s4] sm:$0x1]
    %v1037 = vlaneseq
    %v1038 = vshrl.u32 %v1037, 7
    %v1039 = vsub.s32 0, %v1038
    %v1040 = vrot.slane %v1035, %v1039
    %v1042 = vadd.f32 %v1033, %v1040
    %v1043 = vadd.f32 %v1034, %v1040
    %v1044 = vmax.f32 %v1042, 0.0
    %v1045 = vmax.f32 %v1043, 0.0
    %v1046 = vld [vmem:[%s5] sm:$0xff]
    %v1047 = vld [vmem:[%s5 + $0x8] sm:$0xff]
    %v1048 = vld [vmem:[%s5 + $0x10] sm:$0xff]
    %v1049 = vld [vmem:[%s5 + $0x18] sm:$0xff]
    %v1050 = vld [vmem:[%s5 + $0x20] sm:$0xff]
    %v1051 = vld [vmem:[%s5 + $0x28] sm:$0xff]
    %v1052 = vld [vmem:[%s5 + $0x30] sm:$0xff]
    %v1053 = vld [vmem:[%s5 + $0x38] sm:$0xff]
    %s1054 = scalar_lea.vmem %s5, 64
    %v1055 = vld [vmem:[%s1054] sm:$0xff]
    %v1056 = vld [vmem:[%s1054 + $0x8] sm:$0xff]
    %v1057 = vld [vmem:[%s1054 + $0x10] sm:$0xff]
    %v1058 = vld [vmem:[%s1054 + $0x18] sm:$0xff]
    %v1059 = vld [vmem:[%s1054 + $0x20] sm:$0xff]
    %v1060 = vld [vmem:[%s1054 + $0x28] sm:$0xff]
    %v1061 = vld [vmem:[%s1054 + $0x30] sm:$0xff]
    %v1062 = vld [vmem:[%s1054 + $0x38] sm:$0xff]
    %v1064 = vsel %vm246, %v1045, 0
    %1066 = vmatprep.subr.mxu0 0.0
    %1067 = vmatpush1.msra.mxu0 0.0
    %1068 = vmatprep.subr.mxu0 0.0
    %1069 = vmatpush1.msra.mxu0 0.0
    %1070 = vmatprep.subr.mxu0 0.0
    %1071 = vmatpush1.msra.mxu0 0.0
    %1072 = vmatprep.subr.mxu0 0.0
    %1073 = vmatpush1.msra.mxu0 0.0
    %1074 = vmatprep.subr.mxu0 0.0
    %1075 = vmatpush1.msra.mxu0 0.0
    %1076 = vmatprep.subr.mxu0 0.0
    %1077 = vmatpush1.msra.mxu0 0.0
    %1078 = vmatprep.subr.mxu0 0.0
    %1079 = vmatpush1.msra.mxu0 0.0
    %1080 = vmatprep.subr.mxu0 0.0
    %1081 = vmatpush1.msra.mxu0 0.0
    %1082 = vmatprep.subr.mxu0 0.0
    %1083 = vmatpush1.msra.mxu0 %v1062
    %1084 = vmatprep.subr.mxu0 0.0
    %1085 = vmatpush1.msra.mxu0 %v1061
    %1086 = vmatprep.subr.mxu0 0.0
    %1087 = vmatpush1.msra.mxu0 %v1060
    %1088 = vmatprep.subr.mxu0 0.0
    %1089 = vmatpush1.msra.mxu0 %v1059
    %1090 = vmatprep.subr.mxu0 0.0
    %1091 = vmatpush1.msra.mxu0 %v1058
    %1092 = vmatprep.subr.mxu0 0.0
    %1093 = vmatpush1.msra.mxu0 %v1057
    %1094 = vmatprep.subr.mxu0 0.0
    %1095 = vmatpush1.msra.mxu0 %v1056
    %1096 = vmatprep.subr.mxu0 0.0
    %1097 = vmatpush1.msra.mxu0 %v1055
    %1098 = vmatprep.subr.mxu0 0.0
    %1099 = vmatpush2.msra.mxu0 0.0
    %1100 = vmatprep.subr.mxu0 0.0
    %1101 = vmatpush2.msra.mxu0 0.0
    %1102 = vmatprep.subr.mxu0 0.0
    %1103 = vmatpush2.msra.mxu0 0.0
    %1104 = vmatprep.subr.mxu0 0.0
    %1105 = vmatpush2.msra.mxu0 0.0
    %1106 = vmatprep.subr.mxu0 0.0
    %1107 = vmatpush2.msra.mxu0 0.0
    %1108 = vmatprep.subr.mxu0 0.0
    %1109 = vmatpush2.msra.mxu0 0.0
    %1110 = vmatprep.subr.mxu0 0.0
    %1111 = vmatpush2.msra.mxu0 0.0
    %1112 = vmatprep.subr.mxu0 0.0
    %1113 = vmatpush2.msra.mxu0 0.0
    %1114 = vmatprep.subr.mxu0 0.0
    %1115 = vmatpush2.msra.mxu0 0.0
    %1116 = vmatprep.subr.mxu0 0.0
    %1117 = vmatpush2.msra.mxu0 0.0
    %1118 = vmatprep.subr.mxu0 0.0
    %1119 = vmatpush2.msra.mxu0 0.0
    %1120 = vmatprep.subr.mxu0 0.0
    %1121 = vmatpush2.msra.mxu0 0.0
    %1122 = vmatprep.subr.mxu0 0.0
    %1123 = vmatpush2.msra.mxu0 0.0
    %1124 = vmatprep.subr.mxu0 0.0
    %1125 = vmatpush2.msra.mxu0 0.0
    %1126 = vmatprep.subr.mxu0 0.0
    %1127 = vmatpush2.msra.mxu0 0.0
    %1128 = vmatprep.subr.mxu0 0.0
    %1129 = vmatpush2.msra.mxu0 0.0
    %1130 = vmatprep.mubr.f32.mxu0 0.0
    %1131 = vmatmul.mubr.f32.gmra.mxu0 %v1064
    %v1132 = vpop.f32.mrf.mxu0
    %v1133 = vadd.f32 0.0, %v1132
    %v1134 = vpop.f32.mrf.mxu0
    %1135 = vdwg.mxu0
    %v1137 = vsel %vm246, %v1044, 0
    %1139 = vmatprep.subr.mxu0 0.0
    %1140 = vmatpush1.msra.mxu0 0.0
    %1141 = vmatprep.subr.mxu0 0.0
    %1142 = vmatpush1.msra.mxu0 0.0
    %1143 = vmatprep.subr.mxu0 0.0
    %1144 = vmatpush1.msra.mxu0 0.0
    %1145 = vmatprep.subr.mxu0 0.0
    %1146 = vmatpush1.msra.mxu0 0.0
    %1147 = vmatprep.subr.mxu0 0.0
    %1148 = vmatpush1.msra.mxu0 0.0
    %1149 = vmatprep.subr.mxu0 0.0
    %1150 = vmatpush1.msra.mxu0 0.0
    %1151 = vmatprep.subr.mxu0 0.0
    %1152 = vmatpush1.msra.mxu0 0.0
    %1153 = vmatprep.subr.mxu0 0.0
    %1154 = vmatpush1.msra.mxu0 0.0
    %1155 = vmatprep.subr.mxu0 0.0
    %1156 = vmatpush1.msra.mxu0 %v1053
    %1157 = vmatprep.subr.mxu0 0.0
    %1158 = vmatpush1.msra.mxu0 %v1052
    %1159 = vmatprep.subr.mxu0 0.0
    %1160 = vmatpush1.msra.mxu0 %v1051
    %1161 = vmatprep.subr.mxu0 0.0
    %1162 = vmatpush1.msra.mxu0 %v1050
    %1163 = vmatprep.subr.mxu0 0.0
    %1164 = vmatpush1.msra.mxu0 %v1049
    %1165 = vmatprep.subr.mxu0 0.0
    %1166 = vmatpush1.msra.mxu0 %v1048
    %1167 = vmatprep.subr.mxu0 0.0
    %1168 = vmatpush1.msra.mxu0 %v1047
    %1169 = vmatprep.subr.mxu0 0.0
    %1170 = vmatpush1.msra.mxu0 %v1046
    %1171 = vmatprep.subr.mxu0 0.0
    %1172 = vmatpush2.msra.mxu0 0.0
    %1173 = vmatprep.subr.mxu0 0.0
    %1174 = vmatpush2.msra.mxu0 0.0
    %1175 = vmatprep.subr.mxu0 0.0
    %1176 = vmatpush2.msra.mxu0 0.0
    %1177 = vmatprep.subr.mxu0 0.0
    %1178 = vmatpush2.msra.mxu0 0.0
    %1179 = vmatprep.subr.mxu0 0.0
    %1180 = vmatpush2.msra.mxu0 0.0
    %1181 = vmatprep.subr.mxu0 0.0
    %1182 = vmatpush2.msra.mxu0 0.0
    %1183 = vmatprep.subr.mxu0 0.0
    %1184 = vmatpush2.msra.mxu0 0.0
    %1185 = vmatprep.subr.mxu0 0.0
    %1186 = vmatpush2.msra.mxu0 0.0
    %1187 = vmatprep.subr.mxu0 0.0
    %1188 = vmatpush2.msra.mxu0 0.0
    %1189 = vmatprep.subr.mxu0 0.0
    %1190 = vmatpush2.msra.mxu0 0.0
    %1191 = vmatprep.subr.mxu0 0.0
    %1192 = vmatpush2.msra.mxu0 0.0
    %1193 = vmatprep.subr.mxu0 0.0
    %1194 = vmatpush2.msra.mxu0 0.0
    %1195 = vmatprep.subr.mxu0 0.0
    %1196 = vmatpush2.msra.mxu0 0.0
    %1197 = vmatprep.subr.mxu0 0.0
    %1198 = vmatpush2.msra.mxu0 0.0
    %1199 = vmatprep.subr.mxu0 0.0
    %1200 = vmatpush2.msra.mxu0 0.0
    %1201 = vmatprep.subr.mxu0 0.0
    %1202 = vmatpush2.msra.mxu0 0.0
    %1203 = vmatprep.mubr.f32.mxu0 0.0
    %1204 = vmatmul.mubr.f32.gmra.mxu0 %v1137
    %v1205 = vpop.f32.mrf.mxu0
    %v1206 = vadd.f32 %v1133, %v1205
    %v1207 = vpop.f32.mrf.mxu0
    %1208 = vdwg.mxu0
    %v1209 = vld [vmem:[%s6] sm:$0x1]
    %v1211 = vlaneseq
    %v1212 = vshrl.u32 %v1211, 7
    %v1213 = vsub.s32 0, %v1212
    %v1214 = vrot.slane %v1209, %v1213
    %v1216 = vadd.f32 %v1206, %v1214
    %v1217 = vld [vmem:[%s7] sm:$0x3]
    %vm1218 = vcmp.gt.f32.partialorder %v1217, 0.5
    %v1219 = vsel %vm1218, 0.0, -10000.0
    %v1220 = vadd.f32 %v1216, %v1219
    %vm1221 = vcmask 50176
    %v1222 = vsel %vm1221, %v1220, -inf
    %1223 = vmax.xlane.f32.xlu0 %v1222
    %v1224 = vpop.xlane.xlu0 %1223
    %v1225 = vsub.f32 %v1220, %v1224
    %v1226 = vmul.f32 %v1225, 1.442695
    %v1227 = vpow.pop %v1226
    %v1228 = vsel %vm1221, %v1227, 0.0
    %1229 = vadd.xlane.f32.xlu0 %v1228
    %v1230 = vpop.xlane.xlu0 %1229
    %v1231 = vrcp.pop %v1230
    %v1232 = vmul.f32 %v1227, %v1231
    %1233 = vst.msk [vmem:[#allocation2] sm:$0x3] %vm1221, %v1232
    // Predicated region
    $region34: #{conv_model_forward.1} parent=1 // pred_check
      _
    $region35: #{conv_model_forward.1} parent=1 // pred_check_branch
      %1235 = sbr.rel (0) target = $region37
    $region36: #{conv_model_forward.1} parent=1 // pred_region
      %s1237 = ssub.s32 32, 32
      %1238 = vsyncadd [#allocation3], %s1237
      %s1240 = sshll.u32 [#allocation2], 4
      %s1241 = int_to_ptr.vmem [resolvable:$true] %s1240
      %1243 = dma.vmem_to_hbm [thread:$0]  %s1241, 32, %s8, [#allocation3]
    $region37: #{conv_model_forward.1} parent=1 // pred_fallthru
      _
    // Predicated region
    $region38: #{conv_model_forward.1} parent=1 // pred_check
      _
    $region39: #{conv_model_forward.1} parent=1 // pred_check_branch
      %1245 = sbr.rel (0) target = $region41
    $region40: #{conv_model_forward.1} parent=1 // pred_region
      %1246 = dma.done [#allocation3], 32
    $region41: #{conv_model_forward.1} parent=1 // pred_fallthru
      _
    %1247 = vsyncpa [#allocation3], 1

</llo_original>
